<compile_context>
chip_gen: v5e
topology: v5e:2x2
jax: 0.10.0
libtpu: 0.0.40
codegen_flags: <defaults>
</compile_context>

<pallas_src>
import jax
import jax.numpy as jnp
from jax.experimental import pallas as pl
from jax.experimental.pallas import tpu as pltpu


# ----------------------------- kernels --------------------------------------


def _dense_vpu_kernel(x_ref, w_ref, o_ref):
    """Sublane-dense VPU path.

    x_ref: (Bn, C_in, S, 128) VMEM
    w_ref: (C_out, C_in)      SMEM (f32 scalars)
    o_ref: (Bn, C_out, S, 128) VMEM
    """
    c_in = x_ref.shape[1]
    c_out = o_ref.shape[1]
    for co in range(c_out):                        # static unroll (tiny C_out)
        acc = w_ref[co, 0] * x_ref[:, 0:1, :, :]   # f32 scalar * block -> f32
        for c in range(1, c_in):                   # static unroll (tiny C_in)
            acc = acc + w_ref[co, c] * x_ref[:, c:c + 1, :, :]
        o_ref[:, co:co + 1, :, :] = acc.astype(o_ref.dtype)


def _lane_vpu_kernel(x_ref, w_ref, o_ref):
    """Lane-major VPU path (HW not a multiple of 128, small channels).

    x_ref: (C_in, T) VMEM; w_ref: (C_out, C_in) SMEM; o_ref: (C_out, T) VMEM.
    """
    c_in = x_ref.shape[0]
    c_out = o_ref.shape[0]
    for co in range(c_out):
        acc = w_ref[co, 0] * x_ref[0:1, :]
        for c in range(1, c_in):
            acc = acc + w_ref[co, c] * x_ref[c:c + 1, :]
        o_ref[co:co + 1, :] = acc.astype(o_ref.dtype)


def _lane_mxu_kernel(x_ref, w_ref, o_ref):
    """Lane-major MXU path (larger C_in).

    x_ref: (C_in, T) VMEM; w_ref: (C_out, C_in) VMEM; o_ref: (C_out, T) VMEM.
    Spatial axis last in the contraction -> lane-dense MXU result.
    """
    o_ref[...] = jax.lax.dot_general(
        w_ref[...], x_ref[...], (((1,), (0,)), ((), ())),
        preferred_element_type=jnp.float32).astype(o_ref.dtype)


# --------------------------- tiling planners ---------------------------------

_MIN_GRID_STEPS = 4  # keep enough steps so v7x's 2 TensorCores can share work


def _default_target_bytes():
    """Per-step input-payload target; larger on high-BW / low-VMEM v7x."""
    try:
        info = pltpu.get_tpu_info()
        vmem = getattr(info, "vmem_capacity_bytes", None)
        if vmem is not None and vmem <= (64 << 20):
            return 6 << 20   # v7x-like: ~3.2 TB/s HBM, 64 MiB VMEM
        return 4 << 20       # v5e/v6e: 128 MiB VMEM
    except Exception:
        return 4 << 20


def _plan_dense(N, rows, c_in, itemsize, target_bytes):
    """Pick (Bn, S) for the (Bn, C_in, S, 128) block of the dense layout."""
    per_row = max(1, c_in * 128 * itemsize)
    s = max(1, target_bytes // per_row)
    if s >= rows:
        S = rows                               # full spatial extent per step
    else:
        S = max(8, (s // 8) * 8)               # multiple of 8 sublanes
    if S > rows:
        S = rows

    Bn = 1
    if S == rows:
        # Batch-fold tiny feature maps (exact divisors only: no ragged batch).
        bn_target = max(1, int(target_bytes // max(1, per_row * rows)))
        Bn = max(d for d in range(1, N + 1) if N % d == 0 and d <= bn_target)

    steps = lambda bn, s_: pl.cdiv(N, bn) * pl.cdiv(rows, s_)
    while steps(Bn, S) < _MIN_GRID_STEPS and Bn > 1:
        Bn = max(d for d in range(1, Bn) if N % d == 0)
    while steps(Bn, S) < _MIN_GRID_STEPS and S >= 16:
        S = max(8, (S // 2) // 8 * 8)
    return Bn, S


def _plan_lane(N, HW, c_in, itemsize, target_bytes):
    """Pick lane tile T (multiple of 128, or the full HW extent)."""
    per_lane = max(1, c_in * itemsize)
    t = max(128, target_bytes // per_lane)
    if t >= HW:
        T = HW
    else:
        T = max(128, (t // 128) * 128)
    steps = lambda t_: N * pl.cdiv(HW, t_)
    while steps(T) < _MIN_GRID_STEPS and T >= 1024:
        T = max(128, ((T // 2) // 128) * 128)
    return T


def _vmem_limit_bytes(in_block_bytes, out_block_bytes, w_bytes):
    # Double-buffered input + output, resident weight, plus compiler headroom.
    need = 2 * (in_block_bytes + out_block_bytes) + w_bytes
    return int(min(max(2 * need, 16 << 20), 40 << 20))


# ------------------------------ wrapper --------------------------------------


def netlin_layer(x_nchw, weight, *, target_block_bytes=None):
    """Forward of NetLinLayer (1x1 conv, no bias).

    x_nchw: (N, C_in, H, W)
    weight: (C_out, C_in) or (C_out, C_in, 1, 1)  (nn.Conv2d storage)
    Returns: (N, C_out, H, W)
    """
    # TODO(synk): nn.Dropout in the module is identity at inference; omitted.
    N, C_in, H, W = x_nchw.shape
    C_out = weight.shape[0]
    w2d = weight.reshape(C_out, C_in)

    HW = H * W
    itemsize = jnp.dtype(x_nchw.dtype).itemsize
    if target_block_bytes is None:
        target_block_bytes = _default_target_bytes()

    small_ch = (C_in <= 8 and C_out <= 8)   # VPU-vs-MXU crossover (per review)
    dense_ok = (HW % 128 == 0)

    if small_ch and dense_ok:
        # ---- sublane-dense VPU path -----------------------------------------
        rows = HW // 128
        Bn, S = _plan_dense(N, rows, C_in, itemsize, target_block_bytes)
        x = x_nchw.reshape(N, C_in, rows, 128)          # free reshape
        in_bytes = Bn * C_in * S * 128 * itemsize
        out_bytes = Bn * C_out * S * 128 * itemsize
        out = pl.pallas_call(
            _dense_vpu_kernel,
            out_shape=jax.ShapeDtypeStruct((N, C_out, rows, 128), x_nchw.dtype),
            grid_spec=pltpu.PrefetchScalarGridSpec(
                num_scalar_prefetch=0,
                grid=(pl.cdiv(N, Bn), pl.cdiv(rows, S)),
                in_specs=[
                    pl.BlockSpec((Bn, C_in, S, 128), lambda n, j: (n, 0, j, 0)),
                    # tiny weight: SMEM-resident, read as scalars in-kernel
                    pl.BlockSpec(memory_space=pltpu.MemorySpace.SMEM),
                ],
                out_specs=pl.BlockSpec((Bn, C_out, S, 128),
                                       lambda n, j: (n, 0, j, 0)),
            ),
            compiler_params=pltpu.CompilerParams(
                dimension_semantics=("parallel", "parallel"),
                vmem_limit_bytes=_vmem_limit_bytes(
                    in_bytes, out_bytes, C_out * C_in * 4),
            ),
        )(x, w2d.astype(jnp.float32))
        return out.reshape(N, C_out, H, W)

    # ---- lane-major path (larger C_in, or HW % 128 != 0) ---------------------
    x = x_nchw.reshape(N, C_in, HW)                      # free reshape
    T = _plan_lane(N, HW, C_in, itemsize, target_block_bytes)
    in_bytes = C_in * T * itemsize
    out_bytes = C_out * T * itemsize

    if small_ch:
        kernel = _lane_vpu_kernel
        w_arg = w2d.astype(jnp.float32)
        w_spec = pl.BlockSpec(memory_space=pltpu.MemorySpace.SMEM)
        w_bytes = C_out * C_in * 4
    else:
        kernel = _lane_mxu_kernel
        # Native-dtype operands into the MXU; f32 accumulation via
        # preferred_element_type (no explicit full-tile upcast pass).
        w_arg = w2d.astype(x_nchw.dtype)
        w_spec = pl.BlockSpec((C_out, C_in), lambda n, j: (0, 0))
        w_bytes = C_out * C_in * itemsize

    out = pl.pallas_call(
        kernel,
        out_shape=jax.ShapeDtypeStruct((N, C_out, HW), x_nchw.dtype),
        grid_spec=pltpu.PrefetchScalarGridSpec(
            num_scalar_prefetch=0,
            grid=(N, pl.cdiv(HW, T)),     # ragged last block: no pad, no slice
            in_specs=[
                pl.BlockSpec((None, C_in, T), lambda n, j: (n, 0, j)),
                w_spec,
            ],
            out_specs=pl.BlockSpec((None, C_out, T), lambda n, j: (n, 0, j)),
        ),
        compiler_params=pltpu.CompilerParams(
            dimension_semantics=("parallel", "parallel"),
            vmem_limit_bytes=_vmem_limit_bytes(in_bytes, out_bytes, w_bytes),
        ),
    )(x, w_arg)
    return out.reshape(N, C_out, H, W)


if __name__ == "__main__":
    # Module config: chn_in=4, chn_out=1, use_dropout=False.
    N, C_in, H, W = 2, 4, 16, 16
    C_out = 1

    key = jax.random.PRNGKey(0)
    kx, kw = jax.random.split(key)
    x = jax.random.normal(kx, (N, C_in, H, W), dtype=jnp.float32)
    # Conv2d-style weight storage: (C_out, C_in, 1, 1), bias=False.
    weight = jax.random.normal(kw, (C_out, C_in, 1, 1), dtype=jnp.float32) * 0.1

    y = netlin_layer(x, weight)
    y = jax.block_until_ready(y)

    # Reference: 1x1 conv == per-pixel channel-wise linear map.
    y_ref = jnp.einsum("nchw,oc->nohw", x, weight.reshape(C_out, C_in))
    assert y.shape == (N, C_out, H, W)
    assert jnp.allclose(y, y_ref, atol=1e-5, rtol=1e-5)

    print("KERNEL_OK")
</pallas_src>

<mosaic_0001>
module attributes {stable_mosaic.version = 11 : i64} {
  func.func @_dense_vpu_kernel(%arg0: i32, %arg1: i32, %arg2: memref<1x4x2x128xf32, #tpu.memory_space<vmem>>, %arg3: memref<1x4xf32, #tpu.memory_space<smem>>, %arg4: memref<1x1x2x128xf32, #tpu.memory_space<vmem>>) attributes {dimension_semantics = [#tpu.dimension_semantics<parallel>, #tpu.dimension_semantics<parallel>], iteration_bounds = array<i64: 2, 1>, scalar_prefetch = 0 : i64, scratch_operands = 0 : i64, tpu.core_type = #tpu.core_type<tc>, window_params = [{transform_indices = @transform_0, window_bounds = array<i64: 1, 4, 2, 128>}, {transform_indices = @transform_1, window_bounds = array<i64: 1, 4>}, {transform_indices = @transform_2, window_bounds = array<i64: 1, 1, 2, 128>}]} {
    %c0 = arith.constant 0 : index
    %c0_0 = arith.constant 0 : index
    %0 = memref.load %arg3[%c0, %c0_0] : memref<1x4xf32, #tpu.memory_space<smem>>
    %c0_1 = arith.constant 0 : index
    %c0_2 = arith.constant 0 : index
    %c0_3 = arith.constant 0 : index
    %c0_4 = arith.constant 0 : index
    %1 = vector.load %arg2[%c0_1, %c0_2, %c0_3, %c0_4] : memref<1x4x2x128xf32, #tpu.memory_space<vmem>>, vector<1x1x2x128xf32>
    %2 = vector.broadcast %0 : f32 to vector<1x1x2x128xf32>
    %3 = arith.mulf %2, %1 : vector<1x1x2x128xf32>
    %c0_5 = arith.constant 0 : index
    %c1 = arith.constant 1 : index
    %4 = memref.load %arg3[%c0_5, %c1] : memref<1x4xf32, #tpu.memory_space<smem>>
    %c0_6 = arith.constant 0 : index
    %c1_7 = arith.constant 1 : index
    %c0_8 = arith.constant 0 : index
    %c0_9 = arith.constant 0 : index
    %5 = vector.load %arg2[%c0_6, %c1_7, %c0_8, %c0_9] : memref<1x4x2x128xf32, #tpu.memory_space<vmem>>, vector<1x1x2x128xf32>
    %6 = vector.broadcast %4 : f32 to vector<1x1x2x128xf32>
    %7 = arith.mulf %6, %5 : vector<1x1x2x128xf32>
    %8 = arith.addf %3, %7 : vector<1x1x2x128xf32>
    %c0_10 = arith.constant 0 : index
    %c2 = arith.constant 2 : index
    %9 = memref.load %arg3[%c0_10, %c2] : memref<1x4xf32, #tpu.memory_space<smem>>
    %c0_11 = arith.constant 0 : index
    %c2_12 = arith.constant 2 : index
    %c0_13 = arith.constant 0 : index
    %c0_14 = arith.constant 0 : index
    %10 = vector.load %arg2[%c0_11, %c2_12, %c0_13, %c0_14] : memref<1x4x2x128xf32, #tpu.memory_space<vmem>>, vector<1x1x2x128xf32>
    %11 = vector.broadcast %9 : f32 to vector<1x1x2x128xf32>
    %12 = arith.mulf %11, %10 : vector<1x1x2x128xf32>
    %13 = arith.addf %8, %12 : vector<1x1x2x128xf32>
    %c0_15 = arith.constant 0 : index
    %c3 = arith.constant 3 : index
    %14 = memref.load %arg3[%c0_15, %c3] : memref<1x4xf32, #tpu.memory_space<smem>>
    %c0_16 = arith.constant 0 : index
    %c3_17 = arith.constant 3 : index
    %c0_18 = arith.constant 0 : index
    %c0_19 = arith.constant 0 : index
    %15 = vector.load %arg2[%c0_16, %c3_17, %c0_18, %c0_19] : memref<1x4x2x128xf32, #tpu.memory_space<vmem>>, vector<1x1x2x128xf32>
    %16 = vector.broadcast %14 : f32 to vector<1x1x2x128xf32>
    %17 = arith.mulf %16, %15 : vector<1x1x2x128xf32>
    %18 = arith.addf %13, %17 : vector<1x1x2x128xf32>
    %c0_20 = arith.constant 0 : index
    %c0_21 = arith.constant 0 : index
    %c0_22 = arith.constant 0 : index
    %c0_23 = arith.constant 0 : index
    %19 = vector.load %arg4[%c0_20, %c0_21, %c0_22, %c0_23] : memref<1x1x2x128xf32, #tpu.memory_space<vmem>>, vector<1x1x2x128xf32>
    tpu.vector_store %arg4[%c0_20, %c0_21, %c0_22, %c0_23], %18 {strides = array<i32>} : memref<1x1x2x128xf32, #tpu.memory_space<vmem>>, vector<1x1x2x128xf32>,
    return
  }
  func.func @transform_0(%arg0: i32, %arg1: i32) -> (i32, i32, i32, i32) {
    %c0_i32 = arith.constant 0 : i32
    %c0_i32_0 = arith.constant 0 : i32
    %c0_i32_1 = arith.constant 0 : i32
    return %arg0, %c0_i32, %arg1, %c0_i32_0 : i32, i32, i32, i32
  }
  func.func @transform_1(%arg0: i32, %arg1: i32) -> (i32, i32) {
    %c0_i32 = arith.constant 0 : i32
    %c0_i32_0 = arith.constant 0 : i32
    %c0_i32_1 = arith.constant 0 : i32
    return %c0_i32, %c0_i32_0 : i32, i32
  }
  func.func @transform_2(%arg0: i32, %arg1: i32) -> (i32, i32, i32, i32) {
    %c0_i32 = arith.constant 0 : i32
    %c0_i32_0 = arith.constant 0 : i32
    %c0_i32_1 = arith.constant 0 : i32
    return %arg0, %c0_i32, %arg1, %c0_i32_0 : i32, i32, i32, i32
  }
}

</mosaic_0001>

<llo_original>
// kernel: tpu_custom_call.1
$region0: #{tpu_custom_call.1}
  #allocation0 [shape = 'u32[]', space=smem, size = 0x4, offset = 0x4, fixed_abs, tag = 'smem constant byte address 0x4 - core index']
  #allocation1 [shape = 'u32[72,128]{1,0:T(1,128)}', space=vmem, size = 0x9000, scoped, tag = 'internal scratch']
  %s0 = inlined_call_operand.hbm [shape: f32[2,4,2,128], index: 0, kind: input, shape index: {}]
  %s1 = inlined_call_operand.hbm [shape: f32[1,4], index: 1, kind: input, shape index: {}]
  %s2 = inlined_call_operand.hbm [shape: f32[2,1,2,128], index: 2, kind: output, shape index: {}]
  %s3 = sld [smem:[#allocation0]]
  $region49: #{tpu_custom_call.1} parent=0
    _
  %s5 = ssub.s32 1, %s3
  %s6 = scalar_select 0, %s5, %s3
  $region1: #{tpu_custom_call.1} parent=0
    #allocation2 [shape = 'u8[8192]{0}', space=vmem, size = 0x2000, scoped, tag = 'input window, operand 0']
    #allocation3 [shape = 's32[2]{0}', space=sflag, size = 0x8, scoped, tag = 'scoped memory for tpu_custom_call.1']
    #allocation4 [shape = 's32[2]{0}', space=sflag, size = 0x8, scoped, tag = 'scoped memory for tpu_custom_call.1']
    #allocation5 [shape = 's32[2]{0}', space=sflag, size = 0x8, scoped, tag = 'scoped memory for tpu_custom_call.1']
    #allocation6 [shape = 'u8[512]{0}', space=smem, size = 0x200, scoped, tag = 'input window, operand 1, single buffered']
    #allocation7 [shape = 'u8[2048]{0}', space=vmem, size = 0x800, scoped, tag = 'output window, operand 0']
    %7 = vsyncpa [#allocation3], 0
    %s8 = scalar_lea.sflag [#allocation3], 1
    %9 = vsyncpa %s8, 0
    %10 = vsyncpa [#allocation5], 0
    %11 = vsyncpa [#allocation4], 0
    %s12 = scalar_lea.sflag [#allocation4], 1
    %13 = vsyncpa %s12, 0
    loop: start=0, step=1, limit=4
    $region2: #{tpu_custom_call.1} parent=1 // loop_pre_header
      _
    $region3: #{tpu_custom_call.1} parent=1 // loop_header
      %s15 = sphi 0, %s19
      %p16 = scmp.ge.s32.totalorder %s15, 4
      %s22 = sphi 0, %s34
      %s23 = sphi 0, %s30
      %s24 = sphi 0, %s22
      %s25 = sphi 0, %s23
      %s26 = sphi 0, %s24
      %s27 = sphi 0, %s25
      %s39 = sphi 0, %s41
      %s42 = sphi 0, %s39
      %s43 = sphi 0, %s42
      %s59 = sphi 0, %s43
      %s63 = sphi 0, %s63
      %s65 = sphi 0, %s63
      %s66 = sphi 0, %s65
      %s80 = sphi 0, %s66
      %s88 = sphi 0, %s90
      %s91 = sphi 0, %s88
      %s92 = sphi 0, %s91
      %s108 = sphi 0, %s92
    $region4: #{tpu_custom_call.1} parent=1 // loop_header_branch
      %18 = sbr.rel (%p16) target = $region8
    $region5: #{tpu_custom_call.1} parent=1 // loop_body
      %s20 = ssub.s32 %s15, 1
      %s21 = ssub.s32 %s15, 2
      %s28 = sadd.s32 1, %s23
      %p29 = scmp.ge.s32.totalorder %s28, 1
      %s30 = scalar_select %p29, 0, %s28
      %s31 = sadd.s32 1, %s22
      %s32 = scalar_select %p29, %s31, %s22
      %p33 = scmp.ge.s32.totalorder %s32, 2
      %s34 = scalar_select %p33, 0, %s32
      %s35 = ssub.s32 %s22, %s34
      %s36 = ssub.s32 %s23, %s30
      %s37 = sor.u32 %s35, %s36
      %p38 = scmp.eq.s32.totalorder %s37, 0
      %s40 = sadd.s32 %s39, 1
      %s41 = scalar_select %p38, %s39, %s40
      %p44 = pneg %p38
      %p45 = scmp.eq.s32.totalorder %s15, 1
      %p46 = por %p44, %p45
      %p47 = scmp.ne.s32.totalorder %s39, %s42
      %p48 = scmp.eq.s32.totalorder %s15, 0
      %p49 = por %p47, %p48
      %p50 = scmp.ne.s32.totalorder %s39, %s42
      %p51 = scmp.eq.s32.totalorder %s20, 1
      %p52 = por %p50, %p51
      %p53 = scmp.ne.s32.totalorder %s42, %s43
      %p54 = scmp.eq.s32.totalorder %s20, 0
      %p55 = por %p53, %p54
      %p56 = scmp.ne.s32.totalorder %s42, %s43
      %p57 = scmp.eq.s32.totalorder %s21, 1
      %p58 = por %p56, %p57
      %p60 = scmp.ne.s32.totalorder %s43, %s59
      %p61 = scmp.eq.s32.totalorder %s21, 0
      %p62 = por %p60, %p61
      %s64 = sadd.s32 %s63, 1
      %p67 = scmp.eq.s32.totalorder %s15, 1
      %p68 = scmp.ne.s32.totalorder %s63, %s65
      %p69 = scmp.eq.s32.totalorder %s15, 0
      %p70 = por %p68, %p69
      %p71 = scmp.ne.s32.totalorder %s63, %s65
      %p72 = scmp.eq.s32.totalorder %s20, 1
      %p73 = por %p71, %p72
      %p74 = scmp.ne.s32.totalorder %s65, %s66
      %p75 = scmp.eq.s32.totalorder %s20, 0
      %p76 = por %p74, %p75
      %p77 = scmp.ne.s32.totalorder %s65, %s66
      %p78 = scmp.eq.s32.totalorder %s21, 1
      %p79 = por %p77, %p78
      %p81 = scmp.ne.s32.totalorder %s66, %s80
      %p82 = scmp.eq.s32.totalorder %s21, 0
      %p83 = por %p81, %p82
      %s84 = ssub.s32 %s22, %s34
      %s85 = ssub.s32 %s23, %s30
      %s86 = sor.u32 %s84, %s85
      %p87 = scmp.eq.s32.totalorder %s86, 0
      %s89 = sadd.s32 %s88, 1
      %s90 = scalar_select %p87, %s88, %s89
      %p93 = pneg %p87
      %p94 = scmp.eq.s32.totalorder %s15, 1
      %p95 = por %p93, %p94
      %p96 = scmp.ne.s32.totalorder %s88, %s91
      %p97 = scmp.eq.s32.totalorder %s15, 0
      %p98 = por %p96, %p97
      %p99 = scmp.ne.s32.totalorder %s88, %s91
      %p100 = scmp.eq.s32.totalorder %s20, 1
      %p101 = por %p99, %p100
      %p102 = scmp.ne.s32.totalorder %s91, %s92
      %p103 = scmp.eq.s32.totalorder %s20, 0
      %p104 = por %p102, %p103
      %p105 = scmp.ne.s32.totalorder %s91, %s92
      %p106 = scmp.eq.s32.totalorder %s21, 1
      %p107 = por %p105, %p106
      %p109 = scmp.ne.s32.totalorder %s92, %s108
      %p110 = scmp.eq.s32.totalorder %s21, 0
      %p111 = por %p109, %p110
      %p112 = scmp.le.s32.totalorder 1, %s15
      %p113 = scmp.lt.s32.totalorder %s15, 3
      %p114 = pnand %p112, %p113
      %p115 = pneg %p114
      // Predicated region
      $region9: #{tpu_custom_call.1} parent=5 // pred_check
        _
      $region10: #{tpu_custom_call.1} parent=5 // pred_check_branch
        %117 = sbr.rel (%p114) target = $region12
      $region11: #{tpu_custom_call.1} parent=5 // pred_region
        %s118 = ssub.s32 %s15, 1
        // Predicated region
        $region13: #{tpu_custom_call.1} parent=11 // pred_check
          %p119 = pneg %p76
        $region14: #{tpu_custom_call.1} parent=11 // pred_check_branch
          %121 = sbr.rel (%p119) target = $region16
        $region15: #{tpu_custom_call.1} parent=11 // pred_region
          %123 = vsyncadd [#allocation5], 0
          %s125 = sshll.u32 %s1, 4
          %s126 = int_to_ptr.hbm [resolvable:$true] %s125
          %128 = dma.hbm_to_smem %s126, 16, [#allocation6], [#allocation5]
        $region16: #{tpu_custom_call.1} parent=11 // pred_fallthru
          _
      $region12: #{tpu_custom_call.1} parent=5 // pred_fallthru
        _
      %p129 = scmp.lt.s32.totalorder %s15, 2
      // Predicated region
      $region17: #{tpu_custom_call.1} parent=5 // pred_check
        %p130 = pneg %p129
      $region18: #{tpu_custom_call.1} parent=5 // pred_check_branch
        %132 = sbr.rel (%p130) target = $region20
      $region19: #{tpu_custom_call.1} parent=5 // pred_region
        // Predicated region
        $region21: #{tpu_custom_call.1} parent=19 // pred_check
          %p133 = pneg %p49
        $region22: #{tpu_custom_call.1} parent=19 // pred_check_branch
          %135 = sbr.rel (%p133) target = $region24
        $region23: #{tpu_custom_call.1} parent=19 // pred_region
          %s136 = sand.u32 %s39, 1
          %s137 = scalar_lea.sflag [#allocation3], %s136
          %s138 = sand.u32 %s39, 1
          %s139 = smul.addr %s138, 8
          %s140 = scalar_lea.vmem [#allocation2], %s139
          %142 = vsyncadd %s137, 0
          %s143 = smul.addr %s22, 4
          %s144 = sadd.s32 %s23, %s143
          %s145 = smul.addr %s144, 2
          %s146 = scalar_lea.hbm %s0, %s145
          %s147 = sshll.u32 %s146, 4
          %s148 = int_to_ptr.hbm [resolvable:$true] %s147
          %s149 = sshll.u32 %s140, 4
          %s150 = int_to_ptr.vmem [resolvable:$true] %s149
          %155 = dma.hbm_to_vmem [thread:$0]  %s148, 128, %s150, %s137, 32, 32, 2
        $region24: #{tpu_custom_call.1} parent=19 // pred_fallthru
          _
      $region20: #{tpu_custom_call.1} parent=5 // pred_fallthru
        _
      %p156 = scmp.le.s32.totalorder 1, %s15
      %p157 = scmp.lt.s32.totalorder %s15, 3
      %p158 = pnand %p156, %p157
      %p159 = pneg %p158
      // Predicated region
      $region25: #{tpu_custom_call.1} parent=5 // pred_check
        _
      $region26: #{tpu_custom_call.1} parent=5 // pred_check_branch
        %161 = sbr.rel (%p158) target = $region28
      $region27: #{tpu_custom_call.1} parent=5 // pred_region
        %s162 = ssub.s32 %s15, 1
        %s163 = sand.u32 %s42, 1
        %s164 = scalar_lea.sflag [#allocation3], %s163
        %s165 = sand.u32 %s42, 1
        %s166 = smul.addr %s165, 8
        %s167 = scalar_lea.vmem [#allocation2], %s166
        // Predicated region
        $region29: #{tpu_custom_call.1} parent=27 // pred_check
          %p168 = pneg %p55
        $region30: #{tpu_custom_call.1} parent=27 // pred_check_branch
          %170 = sbr.rel (%p168) target = $region32
        $region31: #{tpu_custom_call.1} parent=27 // pred_region
          %172 = dma.done %s164, 128
        $region32: #{tpu_custom_call.1} parent=27 // pred_fallthru
          _
        // Predicated region
        $region33: #{tpu_custom_call.1} parent=27 // pred_check
          %p173 = pneg %p76
        $region34: #{tpu_custom_call.1} parent=27 // pred_check_branch
          %175 = sbr.rel (%p173) target = $region36
        $region35: #{tpu_custom_call.1} parent=27 // pred_region
          %177 = dma.done [#allocation5], 16
        $region36: #{tpu_custom_call.1} parent=27 // pred_fallthru
          _
        %178 = sfence
        %s179 = sand.u32 %s42, 1
        %s180 = scalar_lea.sflag [#allocation3], %s179
        %s181 = sand.u32 %s42, 1
        %s182 = smul.addr %s181, 8
        %s183 = scalar_lea.vmem [#allocation2], %s182
        %p184 = pneg %p55
        %p185 = pneg %p52
        %p186 = pneg %p76
        %p187 = pneg %p73
        %p188 = pneg %p104
        %p189 = pneg %p101
        %s190 = sand.u32 %s91, 1
        %s191 = scalar_lea.sflag [#allocation4], %s190
        %s192 = sand.u32 %s91, 1
        %s193 = smul.addr %s192, 2
        %s194 = scalar_lea.vmem [#allocation7], %s193
        %s195 = sld [smem:[#allocation6]]
        %v196 = vld [vmem:[%s167] sm:$0x3]
        %v197 = vstv %s195
        %v198 = vmul.f32 %v197, %v196
        %s199 = sld [smem:[#allocation6 + $0x1]]
        %s200 = scalar_lea.vmem %s167, 2 [#allocation2]
        %v201 = vld [vmem:[%s200] sm:$0x3]
        %v202 = vstv %s199
        %v203 = vmul.f32 %v202, %v201
        %v204 = vadd.f32 %v198, %v203
        %s205 = sld [smem:[#allocation6 + $0x2]]
        %s206 = scalar_lea.vmem %s167, 4 [#allocation2]
        %v207 = vld [vmem:[%s206] sm:$0x3]
        %v208 = vstv %s205
        %v209 = vmul.f32 %v208, %v207
        %v210 = vadd.f32 %v204, %v209
        %s211 = sld [smem:[#allocation6 + $0x3]]
        %s212 = scalar_lea.vmem %s167, 6 [#allocation2]
        %v213 = vld [vmem:[%s212] sm:$0x3]
        %v214 = vstv %s211
        %v215 = vmul.f32 %v214, %v213
        %v216 = vadd.f32 %v210, %v215
        %217 = vst [vmem:[%s194] sm:$0x3] %v216
        %s218 = sand.u32 %s91, 1
        %s219 = scalar_lea.sflag [#allocation4], %s218
        %s220 = sand.u32 %s91, 1
        %s221 = smul.addr %s220, 2
        %s222 = scalar_lea.vmem [#allocation7], %s221
        // Predicated region
        $region37: #{tpu_custom_call.1} parent=27 // pred_check
          %p223 = pneg %p101
        $region38: #{tpu_custom_call.1} parent=27 // pred_check_branch
          %225 = sbr.rel (%p223) target = $region40
        $region39: #{tpu_custom_call.1} parent=27 // pred_region
          %227 = vsyncadd %s219, 0
          %s228 = sadd.s32 %s25, %s24
          %s229 = smul.addr %s228, 2
          %s230 = scalar_lea.hbm %s2, %s229
          %s232 = sshll.u32 %s222, 4
          %s233 = int_to_ptr.vmem [resolvable:$true] %s232
          %s234 = sshll.u32 %s230, 4
          %s235 = int_to_ptr.hbm [resolvable:$true] %s234
          %237 = dma.vmem_to_hbm [thread:$0]  %s233, 32, %s235, %s219
        $region40: #{tpu_custom_call.1} parent=27 // pred_fallthru
          _
      $region28: #{tpu_custom_call.1} parent=5 // pred_fallthru
        _
      %p238 = scmp.le.s32.totalorder 2, %s15
      // Predicated region
      $region41: #{tpu_custom_call.1} parent=5 // pred_check
        %p239 = pneg %p238
      $region42: #{tpu_custom_call.1} parent=5 // pred_check_branch
        %241 = sbr.rel (%p239) target = $region44
      $region43: #{tpu_custom_call.1} parent=5 // pred_region
        %s242 = ssub.s32 %s15, 2
        // Predicated region
        $region45: #{tpu_custom_call.1} parent=43 // pred_check
          %p243 = pneg %p107
        $region46: #{tpu_custom_call.1} parent=43 // pred_check_branch
          %245 = sbr.rel (%p243) target = $region48
        $region47: #{tpu_custom_call.1} parent=43 // pred_region
          %s246 = sand.u32 %s92, 1
          %s247 = scalar_lea.sflag [#allocation4], %s246
          %s248 = sand.u32 %s92, 1
          %s249 = smul.addr %s248, 2
          %s250 = scalar_lea.vmem [#allocation7], %s249
          %252 = dma.done %s247, 32
        $region48: #{tpu_custom_call.1} parent=43 // pred_fallthru
          _
      $region44: #{tpu_custom_call.1} parent=5 // pred_fallthru
        _
    $region6: #{tpu_custom_call.1} parent=1 // loop_footer
      %s19 = sadd.s32 1, %s15
    $region7: #{tpu_custom_call.1} parent=1 // loop_footer_branch
      %14 = sbr.rel target = $region3
    $region8: #{tpu_custom_call.1} parent=1 // loop_exit
      _
    %253 = vsyncpa [#allocation3], 1
    %s254 = scalar_lea.sflag [#allocation3], 1
    %255 = vsyncpa %s254, 1
    %256 = vsyncpa [#allocation4], 1
    %s257 = scalar_lea.sflag [#allocation4], 1
    %258 = vsyncpa %s257, 1
    %259 = vsyncpa [#allocation5], 1
    %s260 = scalar_lea.sflag [#allocation5], 1
    %261 = vsyncpa %s260, 1

</llo_original>
